<compile_context>
chip_gen: v6e
topology: v6e:2x2x1
jax: 0.10.0
libtpu: 0.0.40
codegen_flags: <defaults>
</compile_context>

<pallas_src>
import functools

import jax
import jax.numpy as jnp
from jax import lax
from jax.experimental import pallas as pl
from jax.experimental.pallas import tpu as pltpu


# ------------------------------ in-kernel helpers ----------------------------

def _softmax_last(e):
    # Numerically-stable softmax over the last axis.  Exact normalization:
    # the divide lowers to EUP reciprocal + Newton refinement and is effectively
    # free in this memory-bound kernel (approx=True cost ~3e-3 rel. error).
    m = jnp.max(e, axis=-1, keepdims=True)
    p = jnp.exp(e - m)
    s = jnp.sum(p, axis=-1, keepdims=True)
    return p / s


# --------------------------------- kernels -----------------------------------

def _dot_kernel(out_ref, hist_ref, o_ref, *, compute_dtype):
    # e[b,i,j] = out[b,i,:] . hist[b,j,:]  (batched, contracting last axes; no .T)
    a = out_ref[...].astype(compute_dtype)
    h = hist_ref[...].astype(compute_dtype)
    e = lax.dot_general(
        a, h,
        dimension_numbers=(((2,), (2,)), ((0,), (0,))),
        preferred_element_type=jnp.float32)
    o_ref[...] = _softmax_last(e).astype(o_ref.dtype)


def _general_kernel(out_ref, hist_ref, w_ref, o_ref, *, compute_dtype):
    # torch: score = out_i . (W hist_j + b).  The out_i.b term is constant over j
    # and cancels in the softmax over L -> bias dropped.  Fold W onto the smaller
    # out_state side: proj = out @ W (S*H^2 instead of L*H^2 projection flops).
    bt, S, H = out_ref.shape
    a = out_ref[...].astype(compute_dtype)
    w = w_ref[...].astype(compute_dtype)
    if S % 8 == 0:
        # Single (bt*S, H) @ (H, H) MXU push with good sublane fill (v6e/v7x
        # 256-wide MXU); the reshape is layout-free when S is a multiple of 8.
        proj = lax.dot_general(
            a.reshape(bt * S, H), w,
            dimension_numbers=(((1,), (0,)), ((), ())),
            preferred_element_type=jnp.float32).reshape(bt, S, H)
    else:
        proj = lax.dot_general(
            a, w,
            dimension_numbers=(((2,), (0,)), ((), ())),
            preferred_element_type=jnp.float32)                   # (bt, S, H)
    e = lax.dot_general(
        proj.astype(compute_dtype), hist_ref[...].astype(compute_dtype),
        dimension_numbers=(((2,), (2,)), ((0,), (0,))),
        preferred_element_type=jnp.float32)                       # (bt, S, L)
    o_ref[...] = _softmax_last(e).astype(o_ref.dtype)


def _concat_kernel(hist_ref, v_ref, o_ref):
    # e[b,i,j] = other.(W1 out_i) + other.(W2 hist_j) + other.b; the i-dependent
    # and constant terms cancel in the softmax over L, so every state row equals
    # softmax(hist_b @ v) with v = other @ W[:, H:].  VPU mul + reduce, no MXU.
    prod = hist_ref[...].astype(jnp.float32) * v_ref[...].astype(jnp.float32)
    s = jnp.sum(prod, axis=-1)                                    # (bt, L)
    w = _softmax_last(s)                                          # (bt, L)
    o_ref[...] = w[:, None, :].astype(o_ref.dtype)                # (bt, 1, L)


# --------------------------------- wrapper -----------------------------------

def _vmem_budget_bytes():
    """Per-generation working-set budget and matching scoped-VMEM limit."""
    cap = 128 << 20
    try:
        info = pltpu.get_tpu_info()
        cap = int(getattr(info, "vmem_capacity_bytes", cap)) or cap
    except Exception:
        pass
    budget = max(8 << 20, min(cap // 4, 24 << 20))   # ~24 MiB v5e/v6e, ~16 MiB v7x
    limit = max(2 * budget, min(cap // 2, 48 << 20))  # raise the scoped limit to match
    return budget, limit


def _choose_batch_tile(B, per_b_bytes, per_b_dma_bytes, budget,
                       min_steps=4, min_tile_bytes=1 << 20):
    """Largest batch tile fitting ~70% of the budget (headroom for Mosaic
    scratch), while keeping >= min_steps grid steps (2 per TensorCore on v7x,
    pipeline depth on single-TC chips) as long as each tile's DMA stays
    >= ~1 MiB.  Non-divisible B is handled by a masked trailing block."""
    bt = max(1, min(B, int(budget * 0.7) // max(per_b_bytes, 1)))
    target = min(min_steps, B)
    while pl.cdiv(B, bt) < target and bt > 1:
        smaller = max(1, pl.cdiv(B, pl.cdiv(B, bt) + 1))
        if smaller == bt or smaller * per_b_dma_bytes < min_tile_bytes:
            break
        bt = smaller
    return bt


def attn_forward(method, params, out_state, history, *, use_bf16=False,
                 out_dtype=jnp.float32):
    B, S, H = out_state.shape
    _, L, _ = history.shape
    compute_dtype = jnp.bfloat16 if use_bf16 else jnp.float32
    in_isz = out_state.dtype.itemsize
    out_isz = jnp.dtype(out_dtype).itemsize

    budget, vmem_limit = _vmem_budget_bytes()
    cparams = pltpu.CompilerParams(dimension_semantics=("parallel",),
                                   vmem_limit_bytes=int(vmem_limit))

    if method in ("dot", "general"):
        per_b = (2 * in_isz * (S * H + L * H)      # double-buffered input tiles
                 + 2 * out_isz * (S * L)           # double-buffered output tile
                 + 4 * (S * H + S * L))            # f32 proj / energies
        dma_b = in_isz * (S * H + L * H)
    else:  # concat
        per_b = 2 * in_isz * (L * H) + 2 * out_isz * L + 4 * (L * H + L)
        dma_b = in_isz * (L * H)

    bt = _choose_batch_tile(B, per_b, dma_b, budget)
    grid = (pl.cdiv(B, bt),)

    os_spec = pl.BlockSpec((bt, S, H), lambda i: (i, 0, 0))
    hist_spec = pl.BlockSpec((bt, L, H), lambda i: (i, 0, 0))
    o_spec = pl.BlockSpec((bt, S, L), lambda i: (i, 0, 0))

    if method == "dot":
        kern = functools.partial(_dot_kernel, compute_dtype=compute_dtype)
        return pl.pallas_call(
            kern, out_shape=jax.ShapeDtypeStruct((B, S, L), out_dtype),
            grid=grid, in_specs=[os_spec, hist_spec], out_specs=o_spec,
            compiler_params=cparams,
        )(out_state, history)

    elif method == "general":
        W = params["attn_w"]                                # (H, H), torch (out, in)
        w_spec = pl.BlockSpec((H, H), lambda i: (0, 0))
        kern = functools.partial(_general_kernel, compute_dtype=compute_dtype)
        return pl.pallas_call(
            kern, out_shape=jax.ShapeDtypeStruct((B, S, L), out_dtype),
            grid=grid, in_specs=[os_spec, hist_spec, w_spec], out_specs=o_spec,
            compiler_params=cparams,
        )(out_state, history, W)

    elif method == "concat":
        W = params["attn_w"]                                # (H, 2H)
        other = params["other"]                             # (H,)
        # Only the history-dependent part of the score survives the softmax over L.
        v = (other @ W[:, H:]).reshape(1, H).astype(jnp.float32)
        v_spec = pl.BlockSpec((1, H), lambda i: (0, 0))
        wl = pl.pallas_call(
            _concat_kernel, out_shape=jax.ShapeDtypeStruct((B, 1, L), out_dtype),
            grid=grid, in_specs=[hist_spec, v_spec],
            out_specs=pl.BlockSpec((bt, 1, L), lambda i: (i, 0, 0)),
            compiler_params=cparams,
        )(history, v)
        # Broadcast over the state axis in the caller (kernel avoids the S-fold
        # replicated HBM write).
        return jnp.broadcast_to(wl, (B, S, L))

    raise ValueError(f"unknown method: {method}")


# --------------------------- pure-JAX reference ------------------------------

def attn_reference(method, params, out_state, history):
    if method == "dot":
        e = jnp.einsum("bih,bjh->bij", out_state, history)
    elif method == "general":
        ht = jnp.einsum("bjh,oh->bjo", history, params["attn_w"]) + params["attn_b"]
        e = jnp.einsum("bih,bjh->bij", out_state, ht)
    elif method == "concat":
        W, b, other = params["attn_w"], params["attn_b"], params["other"]
        H = out_state.shape[-1]
        u = other @ W[:, :H]
        v = other @ W[:, H:]
        c = other @ b
        e = (out_state @ u)[:, :, None] + (history @ v)[:, None, :] + c
    return jax.nn.softmax(e, axis=2)


if __name__ == "__main__":
    B, S, L, H = 2, 4, 8, 32  # batch, state_len, seq_len, hidden_size
    key = jax.random.PRNGKey(0)
    k1, k2, k3, k4, k5, k6, k7 = jax.random.split(key, 7)

    out_state = jax.random.normal(k1, (B, S, H), dtype=jnp.float32)
    history = jax.random.normal(k2, (B, L, H), dtype=jnp.float32)

    params = {
        "general": {
            "attn_w": jax.random.uniform(k3, (H, H), jnp.float32, -1 / H**0.5, 1 / H**0.5),
            "attn_b": jax.random.uniform(k4, (H,), jnp.float32, -1 / H**0.5, 1 / H**0.5),
        },
        "concat": {
            "attn_w": jax.random.uniform(k5, (H, 2 * H), jnp.float32,
                                         -1 / (2 * H) ** 0.5, 1 / (2 * H) ** 0.5),
            "attn_b": jax.random.uniform(k6, (H,), jnp.float32,
                                         -1 / (2 * H) ** 0.5, 1 / (2 * H) ** 0.5),
            "other": jax.random.normal(k7, (H,), dtype=jnp.float32),
        },
        "dot": {},
    }

    ok = True
    for method in ("dot", "general", "concat"):
        # f32 path vs. reference
        out = jax.block_until_ready(
            attn_forward(method, params[method], out_state, history))
        ref = attn_reference(method, params[method], out_state, history)
        if not jnp.allclose(out, ref, atol=1e-3, rtol=1e-3):
            ok = False
            print(f"MISMATCH for method={method}: max err "
                  f"{float(jnp.max(jnp.abs(out - ref)))}")

        # bf16 MXU path smoke test (rows must still be a valid softmax)
        out_bf = jax.block_until_ready(
            attn_forward(method, params[method], out_state, history, use_bf16=True))
        if not (bool(jnp.all(jnp.isfinite(out_bf)))
                and bool(jnp.allclose(out_bf.sum(-1), 1.0, atol=1e-2))):
            ok = False
            print(f"BF16 SANITY FAIL for method={method}")

    if ok:
        print("KERNEL_OK")
</pallas_src>

<mosaic_0001>
module attributes {stable_mosaic.version = 11 : i64} {
  func.func @_dot_kernel(%arg0: i32, %arg1: memref<2x4x32xf32, #tpu.memory_space<vmem>>, %arg2: memref<2x8x32xf32, #tpu.memory_space<vmem>>, %arg3: memref<2x4x8xf32, #tpu.memory_space<vmem>>) attributes {dimension_semantics = [#tpu.dimension_semantics<parallel>], iteration_bounds = array<i64: 1>, scalar_prefetch = 0 : i64, scratch_operands = 0 : i64, tpu.core_type = #tpu.core_type<tc>, window_params = [{transform_indices = @transform_0, window_bounds = array<i64: 2, 4, 32>}, {transform_indices = @transform_1, window_bounds = array<i64: 2, 8, 32>}, {transform_indices = @transform_2, window_bounds = array<i64: 2, 4, 8>}]} {
    %c0 = arith.constant 0 : index
    %c0_0 = arith.constant 0 : index
    %c0_1 = arith.constant 0 : index
    %0 = vector.load %arg1[%c0, %c0_0, %c0_1] : memref<2x4x32xf32, #tpu.memory_space<vmem>>, vector<2x4x32xf32>
    %c0_2 = arith.constant 0 : index
    %c0_3 = arith.constant 0 : index
    %c0_4 = arith.constant 0 : index
    %1 = vector.load %arg2[%c0_2, %c0_3, %c0_4] : memref<2x8x32xf32, #tpu.memory_space<vmem>>, vector<2x8x32xf32>
    %cst = arith.constant dense<0.000000e+00> : vector<2x4x8xf32>
    %2 = tpu.matmul %0, %1, %cst {dimension_numbers = #tpu.dot_dimension_numbers<[2], [2], [1], [1], [0, 0, 0, 1, 1, 1], [0], [0]>} : vector<2x4x32xf32>, vector<2x8x32xf32>, vector<2x4x8xf32> -> vector<2x4x8xf32>
    %cst_5 = arith.constant dense<0xFF800000> : vector<2x4xf32>
    %3 = vector.multi_reduction <maximumf>, %2, %cst_5 [2] : vector<2x4x8xf32> to vector<2x4xf32>
    %4 = vector.shape_cast %3 : vector<2x4xf32> to vector<2x4x1xf32>
    %5 = vector.broadcast %4 : vector<2x4x1xf32> to vector<2x4x8xf32>
    %6 = arith.subf %2, %5 : vector<2x4x8xf32>
    %7 = math.exp %6 : vector<2x4x8xf32>
    %cst_6 = arith.constant dense<0.000000e+00> : vector<2x4xf32>
    %8 = vector.multi_reduction <add>, %7, %cst_6 [2] : vector<2x4x8xf32> to vector<2x4xf32>
    %9 = vector.shape_cast %8 : vector<2x4xf32> to vector<2x4x1xf32>
    %10 = vector.broadcast %9 : vector<2x4x1xf32> to vector<2x4x8xf32>
    %11 = arith.divf %7, %10 : vector<2x4x8xf32>
    %c0_7 = arith.constant 0 : index
    %c0_8 = arith.constant 0 : index
    %c0_9 = arith.constant 0 : index
    %12 = vector.load %arg3[%c0_7, %c0_8, %c0_9] : memref<2x4x8xf32, #tpu.memory_space<vmem>>, vector<2x4x8xf32>
    tpu.vector_store %arg3[%c0_7, %c0_8, %c0_9], %11 {strides = array<i32>} : memref<2x4x8xf32, #tpu.memory_space<vmem>>, vector<2x4x8xf32>,
    return
  }
  func.func @transform_0(%arg0: i32) -> (i32, i32, i32) {
    %c0_i32 = arith.constant 0 : i32
    %c0_i32_0 = arith.constant 0 : i32
    %c0_i32_1 = arith.constant 0 : i32
    return %arg0, %c0_i32, %c0_i32_0 : i32, i32, i32
  }
  func.func @transform_1(%arg0: i32) -> (i32, i32, i32) {
    %c0_i32 = arith.constant 0 : i32
    %c0_i32_0 = arith.constant 0 : i32
    %c0_i32_1 = arith.constant 0 : i32
    return %arg0, %c0_i32, %c0_i32_0 : i32, i32, i32
  }
  func.func @transform_2(%arg0: i32) -> (i32, i32, i32) {
    %c0_i32 = arith.constant 0 : i32
    %c0_i32_0 = arith.constant 0 : i32
    %c0_i32_1 = arith.constant 0 : i32
    return %arg0, %c0_i32, %c0_i32_0 : i32, i32, i32
  }
}

</mosaic_0001>

<llo_original>
// kernel: tpu_custom_call.1
$region0: #{tpu_custom_call.1}
  #allocation0 [shape = 'u32[]', space=smem, size = 0x4, offset = 0x4, fixed_abs, tag = 'smem constant byte address 0x4 - core index']
  #allocation1 [shape = 'u32[144,128]{1,0:T(1,128)}', space=vmem, size = 0x12000, scoped, tag = 'internal scratch']
  %s0 = inlined_call_operand.hbm [shape: f32[2,4,32], index: 0, kind: input, shape index: {}]
  %s1 = inlined_call_operand.hbm [shape: f32[2,8,32], index: 1, kind: input, shape index: {}]
  %s2 = inlined_call_operand.hbm [shape: f32[2,4,8], index: 2, kind: output, shape index: {}]
  %s3 = sld [smem:[#allocation0]]
  $region26: #{tpu_custom_call.1} parent=0
    _
  %s5 = ssub.s32 1, %s3
  %s6 = scalar_select 0, %s5, %s3
  $region1: #{tpu_custom_call.1} parent=0
    #allocation2 [shape = 'u8[4096]{0}', space=vmem, size = 0x1000, scoped, tag = 'input window, operand 0, single buffered']
    #allocation3 [shape = 's32[1]{0}', space=sflag, size = 0x4, scoped, tag = 'scoped memory for tpu_custom_call.1']
    #allocation4 [shape = 's32[1]{0}', space=sflag, size = 0x4, scoped, tag = 'scoped memory for tpu_custom_call.1']
    #allocation5 [shape = 'u8[8192]{0}', space=vmem, size = 0x2000, scoped, tag = 'input window, operand 1, single buffered']
    #allocation6 [shape = 's32[1]{0}', space=sflag, size = 0x4, scoped, tag = 'scoped memory for tpu_custom_call.1']
    #allocation7 [shape = 'u8[4096]{0}', space=vmem, size = 0x1000, scoped, tag = 'output window, operand 0, single buffered']
    %7 = vsyncpa [#allocation3], 0
    %8 = vsyncpa [#allocation6], 0
    %9 = vsyncpa [#allocation4], 0
    // Predicated region
    $region2: #{tpu_custom_call.1} parent=1 // pred_check
      _
    $region3: #{tpu_custom_call.1} parent=1 // pred_check_branch
      %11 = sbr.rel (0) target = $region5
    $region4: #{tpu_custom_call.1} parent=1 // pred_region
      %s13 = ssub.s32 128, 128
      %14 = vsyncadd [#allocation3], %s13
      %s15 = sshll.u32 [#allocation2], 4
      %s16 = int_to_ptr.vmem [resolvable:$true] %s15
      %21 = dma.hbm_to_vmem [thread:$0]  %s0, 128, %s16, [#allocation3], 64, 64, 4
    $region5: #{tpu_custom_call.1} parent=1 // pred_fallthru
      _
    // Predicated region
    $region6: #{tpu_custom_call.1} parent=1 // pred_check
      _
    $region7: #{tpu_custom_call.1} parent=1 // pred_check_branch
      %23 = sbr.rel (0) target = $region9
    $region8: #{tpu_custom_call.1} parent=1 // pred_region
      %s25 = ssub.s32 256, 256
      %26 = vsyncadd [#allocation6], %s25
      %s27 = sshll.u32 [#allocation5], 4
      %s28 = int_to_ptr.vmem [resolvable:$true] %s27
      %33 = dma.hbm_to_vmem [thread:$0]  %s1, 256, %s28, [#allocation6], 128, 128, 8
    $region9: #{tpu_custom_call.1} parent=1 // pred_fallthru
      _
    // Predicated region
    $region10: #{tpu_custom_call.1} parent=1 // pred_check
      _
    $region11: #{tpu_custom_call.1} parent=1 // pred_check_branch
      %35 = sbr.rel (0) target = $region13
    $region12: #{tpu_custom_call.1} parent=1 // pred_region
      %36 = dma.done [#allocation3], 128
    $region13: #{tpu_custom_call.1} parent=1 // pred_fallthru
      _
    // Predicated region
    $region14: #{tpu_custom_call.1} parent=1 // pred_check
      _
    $region15: #{tpu_custom_call.1} parent=1 // pred_check_branch
      %38 = sbr.rel (0) target = $region17
    $region16: #{tpu_custom_call.1} parent=1 // pred_region
      %39 = dma.done [#allocation6], 256
    $region17: #{tpu_custom_call.1} parent=1 // pred_fallthru
      _
    %v40 = vld [vmem:[#allocation2] sm:$0xf]
    %v41 = vld [vmem:[#allocation2 + $0x4] sm:$0xf]
    %v42 = vld [vmem:[#allocation5] sm:$0xff]
    %v43 = vld [vmem:[#allocation5 + $0x8] sm:$0xff]
    %vm44 = vcmask 261120
    %v46 = vsel %vm44, %v40, 0
    %v49 = vsel %vm44, %v42, 0
    %51 = vmatprep.subr.mxu0 0.0
    %52 = vmatpush1.xpose.msra.mxu0 0.0
    %53 = vmatprep.subr.mxu0 0.0
    %54 = vmatpush1.xpose.msra.mxu0 0.0
    %55 = vmatprep.subr.mxu0 0.0
    %56 = vmatpush1.xpose.msra.mxu0 0.0
    %57 = vmatprep.subr.mxu0 0.0
    %58 = vmatpush1.xpose.msra.mxu0 0.0
    %59 = vmatprep.subr.mxu0 0.0
    %60 = vmatpush1.xpose.msra.mxu0 0.0
    %61 = vmatprep.subr.mxu0 0.0
    %62 = vmatpush1.xpose.msra.mxu0 0.0
    %63 = vmatprep.subr.mxu0 0.0
    %64 = vmatpush1.xpose.msra.mxu0 0.0
    %65 = vmatprep.subr.mxu0 0.0
    %66 = vmatpush1.xpose.msra.mxu0 0.0
    %67 = vmatprep.subr.mxu0 0.0
    %68 = vmatpush1.xpose.msra.mxu0 0.0
    %69 = vmatprep.subr.mxu0 0.0
    %70 = vmatpush1.xpose.msra.mxu0 0.0
    %71 = vmatprep.subr.mxu0 0.0
    %72 = vmatpush1.xpose.msra.mxu0 0.0
    %73 = vmatprep.subr.mxu0 0.0
    %74 = vmatpush1.xpose.msra.mxu0 0.0
    %75 = vmatprep.subr.mxu0 0.0
    %76 = vmatpush1.xpose.msra.mxu0 0.0
    %77 = vmatprep.subr.mxu0 0.0
    %78 = vmatpush1.xpose.msra.mxu0 0.0
    %79 = vmatprep.subr.mxu0 0.0
    %80 = vmatpush1.xpose.msra.mxu0 0.0
    %81 = vmatprep.subr.mxu0 0.0
    %82 = vmatpush1.xpose.msra.mxu0 %v49
    %83 = vmatprep.subr.mxu0 0.0
    %84 = vmatpush2.xpose.msra.mxu0 0.0
    %85 = vmatprep.subr.mxu0 0.0
    %86 = vmatpush2.xpose.msra.mxu0 0.0
    %87 = vmatprep.subr.mxu0 0.0
    %88 = vmatpush2.xpose.msra.mxu0 0.0
    %89 = vmatprep.subr.mxu0 0.0
    %90 = vmatpush2.xpose.msra.mxu0 0.0
    %91 = vmatprep.subr.mxu0 0.0
    %92 = vmatpush2.xpose.msra.mxu0 0.0
    %93 = vmatprep.subr.mxu0 0.0
    %94 = vmatpush2.xpose.msra.mxu0 0.0
    %95 = vmatprep.subr.mxu0 0.0
    %96 = vmatpush2.xpose.msra.mxu0 0.0
    %97 = vmatprep.subr.mxu0 0.0
    %98 = vmatpush2.xpose.msra.mxu0 0.0
    %99 = vmatprep.subr.mxu0 0.0
    %100 = vmatpush2.xpose.msra.mxu0 0.0
    %101 = vmatprep.subr.mxu0 0.0
    %102 = vmatpush2.xpose.msra.mxu0 0.0
    %103 = vmatprep.subr.mxu0 0.0
    %104 = vmatpush2.xpose.msra.mxu0 0.0
    %105 = vmatprep.subr.mxu0 0.0
    %106 = vmatpush2.xpose.msra.mxu0 0.0
    %107 = vmatprep.subr.mxu0 0.0
    %108 = vmatpush2.xpose.msra.mxu0 0.0
    %109 = vmatprep.subr.mxu0 0.0
    %110 = vmatpush2.xpose.msra.mxu0 0.0
    %111 = vmatprep.subr.mxu0 0.0
    %112 = vmatpush2.xpose.msra.mxu0 0.0
    %113 = vmatprep.subr.mxu0 0.0
    %114 = vmatpush2.xpose.msra.mxu0 0.0
    %115 = vmatprep.mubr.f32.mxu0 0.0
    %116 = vmatmul.mubr.f32.gmra.mxu0 %v46
    %v117 = vpop.f32.mrf.mxu0
    %v118 = vadd.f32 0.0, %v117
    %v119 = vpop.f32.mrf.mxu0
    %120 = vdwg.mxu0
    %v122 = vsel %vm44, %v41, 0
    %v125 = vsel %vm44, %v43, 0
    %127 = vmatprep.subr.mxu0 0.0
    %128 = vmatpush1.xpose.msra.mxu0 0.0
    %129 = vmatprep.subr.mxu0 0.0
    %130 = vmatpush1.xpose.msra.mxu0 0.0
    %131 = vmatprep.subr.mxu0 0.0
    %132 = vmatpush1.xpose.msra.mxu0 0.0
    %133 = vmatprep.subr.mxu0 0.0
    %134 = vmatpush1.xpose.msra.mxu0 0.0
    %135 = vmatprep.subr.mxu0 0.0
    %136 = vmatpush1.xpose.msra.mxu0 0.0
    %137 = vmatprep.subr.mxu0 0.0
    %138 = vmatpush1.xpose.msra.mxu0 0.0
    %139 = vmatprep.subr.mxu0 0.0
    %140 = vmatpush1.xpose.msra.mxu0 0.0
    %141 = vmatprep.subr.mxu0 0.0
    %142 = vmatpush1.xpose.msra.mxu0 0.0
    %143 = vmatprep.subr.mxu0 0.0
    %144 = vmatpush1.xpose.msra.mxu0 0.0
    %145 = vmatprep.subr.mxu0 0.0
    %146 = vmatpush1.xpose.msra.mxu0 0.0
    %147 = vmatprep.subr.mxu0 0.0
    %148 = vmatpush1.xpose.msra.mxu0 0.0
    %149 = vmatprep.subr.mxu0 0.0
    %150 = vmatpush1.xpose.msra.mxu0 0.0
    %151 = vmatprep.subr.mxu0 0.0
    %152 = vmatpush1.xpose.msra.mxu0 0.0
    %153 = vmatprep.subr.mxu0 0.0
    %154 = vmatpush1.xpose.msra.mxu0 0.0
    %155 = vmatprep.subr.mxu0 0.0
    %156 = vmatpush1.xpose.msra.mxu0 0.0
    %157 = vmatprep.subr.mxu0 0.0
    %158 = vmatpush1.xpose.msra.mxu0 %v125
    %159 = vmatprep.subr.mxu0 0.0
    %160 = vmatpush2.xpose.msra.mxu0 0.0
    %161 = vmatprep.subr.mxu0 0.0
    %162 = vmatpush2.xpose.msra.mxu0 0.0
    %163 = vmatprep.subr.mxu0 0.0
    %164 = vmatpush2.xpose.msra.mxu0 0.0
    %165 = vmatprep.subr.mxu0 0.0
    %166 = vmatpush2.xpose.msra.mxu0 0.0
    %167 = vmatprep.subr.mxu0 0.0
    %168 = vmatpush2.xpose.msra.mxu0 0.0
    %169 = vmatprep.subr.mxu0 0.0
    %170 = vmatpush2.xpose.msra.mxu0 0.0
    %171 = vmatprep.subr.mxu0 0.0
    %172 = vmatpush2.xpose.msra.mxu0 0.0
    %173 = vmatprep.subr.mxu0 0.0
    %174 = vmatpush2.xpose.msra.mxu0 0.0
    %175 = vmatprep.subr.mxu0 0.0
    %176 = vmatpush2.xpose.msra.mxu0 0.0
    %177 = vmatprep.subr.mxu0 0.0
    %178 = vmatpush2.xpose.msra.mxu0 0.0
    %179 = vmatprep.subr.mxu0 0.0
    %180 = vmatpush2.xpose.msra.mxu0 0.0
    %181 = vmatprep.subr.mxu0 0.0
    %182 = vmatpush2.xpose.msra.mxu0 0.0
    %183 = vmatprep.subr.mxu0 0.0
    %184 = vmatpush2.xpose.msra.mxu0 0.0
    %185 = vmatprep.subr.mxu0 0.0
    %186 = vmatpush2.xpose.msra.mxu0 0.0
    %187 = vmatprep.subr.mxu0 0.0
    %188 = vmatpush2.xpose.msra.mxu0 0.0
    %189 = vmatprep.subr.mxu0 0.0
    %190 = vmatpush2.xpose.msra.mxu0 0.0
    %191 = vmatprep.mubr.f32.mxu0 0.0
    %192 = vmatmul.mubr.f32.gmra.mxu0 %v122
    %v193 = vpop.f32.mrf.mxu0
    %v194 = vadd.f32 0.0, %v193
    %v195 = vpop.f32.mrf.mxu0
    %196 = vdwg.mxu0
    %vm197 = vcmask 60416
    %v198 = vsel %vm197, %v118, -inf
    %199 = vmax.xlane.f32.xlu0 %v198
    %v200 = vpop.xlane.xlu0 %199
    %v201 = vsel %vm197, %v194, -inf
    %202 = vmax.xlane.f32.xlu0 %v201
    %v203 = vpop.xlane.xlu0 %202
    %v204 = vsub.f32 %v118, %v200
    %v205 = vsub.f32 %v194, %v203
    %v206 = vmul.f32 %v204, 1.442695
    %v207 = vpow.pop %v206
    %v208 = vmul.f32 %v205, 1.442695
    %v209 = vpow.pop %v208
    %v210 = vsel %vm197, %v207, 0.0
    %211 = vadd.xlane.f32.xlu0 %v210
    %v212 = vpop.xlane.xlu0 %211
    %v213 = vsel %vm197, %v209, 0.0
    %214 = vadd.xlane.f32.xlu0 %v213
    %v215 = vpop.xlane.xlu0 %214
    %v216 = vrcp.pop %v212
    %v217 = vmul.f32 %v207, %v216
    %v218 = vrcp.pop %v215
    %v219 = vmul.f32 %v209, %v218
    %220 = vst.msk [vmem:[#allocation7] sm:$0xf] %vm197, %v217
    %221 = vst.msk [vmem:[#allocation7 + $0x4] sm:$0xf] %vm197, %v219
    // Predicated region
    $region18: #{tpu_custom_call.1} parent=1 // pred_check
      _
    $region19: #{tpu_custom_call.1} parent=1 // pred_check_branch
      %223 = sbr.rel (0) target = $region21
    $region20: #{tpu_custom_call.1} parent=1 // pred_region
      %s225 = ssub.s32 128, 128
      %226 = vsyncadd [#allocation4], %s225
      %s227 = sshll.u32 [#allocation7], 4
      %s228 = int_to_ptr.vmem [resolvable:$true] %s227
      %233 = dma.vmem_to_hbm [thread:$0]  %s228, 128, %s2, [#allocation4], 64, 64, 4
    $region21: #{tpu_custom_call.1} parent=1 // pred_fallthru
      _
    // Predicated region
    $region22: #{tpu_custom_call.1} parent=1 // pred_check
      _
    $region23: #{tpu_custom_call.1} parent=1 // pred_check_branch
      %235 = sbr.rel (0) target = $region25
    $region24: #{tpu_custom_call.1} parent=1 // pred_region
      %236 = dma.done [#allocation4], 128
    $region25: #{tpu_custom_call.1} parent=1 // pred_fallthru
      _
    %237 = vsyncpa [#allocation3], 1
    %238 = vsyncpa [#allocation6], 1
    %239 = vsyncpa [#allocation4], 1

</llo_original>
